<compile_context>
chip_gen: v7x
topology: tpu7x:2x2x1
jax: 0.10.0
libtpu: 0.0.40
codegen_flags: <defaults>
</compile_context>

<pallas_src>
import functools

import jax
import jax.numpy as jnp
from jax.experimental import pallas as pl
from jax.experimental.pallas import tpu as pltpu


def _round_up(x, m):
    return ((x + m - 1) // m) * m


def _sdsnr_partials_kernel(pred_ref, x0_ref,
                           dot_out, cc_out, ee_out,
                           dot_acc, cc_acc, ee_acc,
                           *, rows_total, tile_rows, k_per, need_mask):
    """Accumulate per-sample dot / ||clean||^2 / ||clean-est||^2 partials.

    pred_ref, x0_ref        : (B, TILE_ROWS, 128) blocks in VMEM
    dot_out, cc_out, ee_out : (1, B, 128) per-core lane partials (written on the
                              last step of the inner reduction axis)
    *_acc                   : (B, TILE_ROWS, 128) f32 VMEM accumulators
    """
    c = pl.program_id(0)
    k = pl.program_id(1)

    @pl.when(k == 0)
    def _init():
        dot_acc[...] = jnp.zeros_like(dot_acc)
        cc_acc[...] = jnp.zeros_like(cc_acc)
        ee_acc[...] = jnp.zeros_like(ee_acc)

    est = pred_ref[...].astype(jnp.float32)     # (B, TR, 128)
    clean = x0_ref[...].astype(jnp.float32)

    if need_mask:
        # Logical (unclamped) chunk index for this step; rows at/above the true
        # row count (tail chunk or clamped duplicate chunk) contribute zero.
        chunk = c * k_per + k
        row_ids = chunk * tile_rows + jax.lax.broadcasted_iota(
            jnp.int32, est.shape, 1)
        valid = row_ids < rows_total
        est = jnp.where(valid, est, 0.0)
        clean = jnp.where(valid, clean, 0.0)

    # Pure VPU multiply-adds; no per-step cross-lane/sublane reduction.
    dot_acc[...] += est * clean
    cc_acc[...] += clean * clean
    err = clean - est
    ee_acc[...] += err * err

    @pl.when(k == pl.num_programs(1) - 1)
    def _finalize():
        dot_out[...] = jnp.sum(dot_acc[...], axis=1)[None]   # (1, B, 128)
        cc_out[...] = jnp.sum(cc_acc[...], axis=1)[None]
        ee_out[...] = jnp.sum(ee_acc[...], axis=1)[None]


@jax.jit
def sdsnr_loss(pred_x0, x0):
    """Pallas implementation of ScaleDependentSNR.forward (transform=None)."""
    assert pred_x0.shape == x0.shape
    b = pred_x0.shape[0]

    pred2 = pred_x0.reshape(b, -1)
    x02 = x0.reshape(b, -1)
    d = pred2.shape[1]

    if d % 128 != 0:
        # TODO(synk): rare fallback — zero padding leaves dot/cc/ee unchanged but
        # costs one extra HBM copy of each operand; the common D%128==0 path is
        # pad-free.
        pad = 128 - d % 128
        pred2 = jnp.pad(pred2, ((0, 0), (0, pad)))
        x02 = jnp.pad(x02, ((0, 0), (0, pad)))
        d += pad

    r = d // 128
    pred3 = pred2.reshape(b, r, 128)   # free (row-major contiguous) reshape
    x03 = x02.reshape(b, r, 128)

    itemsize = jnp.dtype(pred3.dtype).itemsize
    # ~2 MiB per input block; 2 inputs x 2 pipeline buffers + 3 f32 accumulators
    # stays well under a 32 MiB scoped-VMEM limit on v5e / v6e / v7x.
    target_rows = max(8, (2 * 1024 * 1024) // (b * 128 * itemsize))
    tr = min(target_rows, _round_up(r, 8))
    tr = max(8, (tr // 8) * 8)

    r_chunks = pl.cdiv(r, tr)
    nc = 2 if r_chunks >= 2 else 1          # leading axis split across v7x TCs
    k_per = pl.cdiv(r_chunks, nc)
    need_mask = (nc * k_per * tr) > r

    def in_map(c, k):
        # Clamp to a valid chunk; out-of-range (duplicate) chunks are fully
        # masked inside the kernel, so the data loaded does not matter.
        chunk = jnp.minimum(c * k_per + k, r_chunks - 1)
        return (0, chunk, 0)

    def out_map(c, k):
        return (c, 0, 0)

    kernel = functools.partial(
        _sdsnr_partials_kernel,
        rows_total=r, tile_rows=tr, k_per=k_per, need_mask=need_mask)

    part_shape = jax.ShapeDtypeStruct((nc, b, 128), jnp.float32)
    parts_dot, parts_cc, parts_ee = pl.pallas_call(
        kernel,
        out_shape=(part_shape, part_shape, part_shape),
        grid_spec=pltpu.PrefetchScalarGridSpec(
            num_scalar_prefetch=0,
            grid=(nc, k_per),
            in_specs=[
                pl.BlockSpec((b, tr, 128), in_map),
                pl.BlockSpec((b, tr, 128), in_map),
            ],
            out_specs=[
                pl.BlockSpec((1, b, 128), out_map),
                pl.BlockSpec((1, b, 128), out_map),
                pl.BlockSpec((1, b, 128), out_map),
            ],
            scratch_shapes=[pltpu.VMEM((b, tr, 128), jnp.float32)] * 3,
        ),
        compiler_params=pltpu.CompilerParams(
            dimension_semantics=("parallel", "arbitrary"),
            vmem_limit_bytes=32 * 1024 * 1024,
        ),
    )(pred3, x03)

    # Combine per-core lane partials (tiny) and finish the SDSNR math.
    dot = jnp.sum(parts_dot, axis=(0, 2))   # (B,)
    cc = jnp.sum(parts_cc, axis=(0, 2))
    ee = jnp.sum(parts_ee, axis=(0, 2))
    # ||alpha*clean||^2 = dot^2 / cc  =>  sdsnr = 10*log10(dot^2 / (cc*ee))
    sdsnr = 10.0 * jnp.log10((dot * dot) / (cc * ee))
    return -jnp.mean(sdsnr)


if __name__ == "__main__":
    key = jax.random.PRNGKey(0)
    k1, k2 = jax.random.split(key)
    shape = (2, 4, 16, 16)  # (B, C, H, W) -> D = 1024
    pred_x0 = jax.random.normal(k1, shape, dtype=jnp.float32)
    x0 = jax.random.normal(k2, shape, dtype=jnp.float32)

    loss = sdsnr_loss(pred_x0, x0)
    loss = jax.block_until_ready(loss)

    # Pure-JAX reference mirroring the PyTorch forward.
    bsz = shape[0]
    est = pred_x0.reshape(bsz, -1)
    cln = x0.reshape(bsz, -1)
    alpha = (jnp.sum(est * cln, axis=-1) / jnp.sum(cln * cln, axis=-1))[:, None]
    num = jnp.sum(jnp.square(alpha * cln), axis=-1)
    den = jnp.sum(jnp.square(cln - est), axis=-1)
    ref = -jnp.mean(10.0 * jnp.log10(num / den))

    assert jnp.allclose(loss, ref, rtol=1e-4, atol=1e-4), (loss, ref)

    print("KERNEL_OK")
</pallas_src>

<mosaic_0001>
module attributes {stable_mosaic.version = 11 : i64} {
  func.func @_sdsnr_partials_kernel(%arg0: i32, %arg1: i32, %arg2: memref<2x8x128xf32, #tpu.memory_space<vmem>>, %arg3: memref<2x8x128xf32, #tpu.memory_space<vmem>>, %arg4: memref<1x2x128xf32, #tpu.memory_space<vmem>>, %arg5: memref<1x2x128xf32, #tpu.memory_space<vmem>>, %arg6: memref<1x2x128xf32, #tpu.memory_space<vmem>>, %arg7: memref<2x8x128xf32, #tpu.memory_space<vmem>>, %arg8: memref<2x8x128xf32, #tpu.memory_space<vmem>>, %arg9: memref<2x8x128xf32, #tpu.memory_space<vmem>>) attributes {dimension_semantics = [#tpu.dimension_semantics<parallel>, #tpu.dimension_semantics<arbitrary>], iteration_bounds = array<i64: 1, 1>, scalar_prefetch = 0 : i64, scratch_operands = 3 : i64, tpu.core_type = #tpu.core_type<tc>, window_params = [{transform_indices = @transform_0, window_bounds = array<i64: 2, 8, 128>}, {transform_indices = @transform_1, window_bounds = array<i64: 2, 8, 128>}, {transform_indices = @transform_2, window_bounds = array<i64: 1, 2, 128>}, {transform_indices = @transform_3, window_bounds = array<i64: 1, 2, 128>}, {transform_indices = @transform_4, window_bounds = array<i64: 1, 2, 128>}]} {
    %c0_i32 = arith.constant 0 : i32
    %0 = arith.cmpi eq, %arg1, %c0_i32 : i32
    %1 = arith.extui %0 : i1 to i32
    %c0_i32_0 = arith.constant 0 : i32
    %2 = arith.cmpi ne, %1, %c0_i32_0 : i32
    scf.if %2 {
      %cst = arith.constant 0.000000e+00 : f32
      %21 = vector.broadcast %cst : f32 to vector<2x8x128xf32>
      %c0_26 = arith.constant 0 : index
      %c0_27 = arith.constant 0 : index
      %c0_28 = arith.constant 0 : index
      %22 = vector.load %arg7[%c0_26, %c0_27, %c0_28] : memref<2x8x128xf32, #tpu.memory_space<vmem>>, vector<2x8x128xf32>
      tpu.vector_store %arg7[%c0_26, %c0_27, %c0_28], %21 {strides = array<i32>} : memref<2x8x128xf32, #tpu.memory_space<vmem>>, vector<2x8x128xf32>,
      %cst_29 = arith.constant 0.000000e+00 : f32
      %23 = vector.broadcast %cst_29 : f32 to vector<2x8x128xf32>
      %c0_30 = arith.constant 0 : index
      %c0_31 = arith.constant 0 : index
      %c0_32 = arith.constant 0 : index
      %24 = vector.load %arg8[%c0_30, %c0_31, %c0_32] : memref<2x8x128xf32, #tpu.memory_space<vmem>>, vector<2x8x128xf32>
      tpu.vector_store %arg8[%c0_30, %c0_31, %c0_32], %23 {strides = array<i32>} : memref<2x8x128xf32, #tpu.memory_space<vmem>>, vector<2x8x128xf32>,
      %cst_33 = arith.constant 0.000000e+00 : f32
      %25 = vector.broadcast %cst_33 : f32 to vector<2x8x128xf32>
      %c0_34 = arith.constant 0 : index
      %c0_35 = arith.constant 0 : index
      %c0_36 = arith.constant 0 : index
      %26 = vector.load %arg9[%c0_34, %c0_35, %c0_36] : memref<2x8x128xf32, #tpu.memory_space<vmem>>, vector<2x8x128xf32>
      tpu.vector_store %arg9[%c0_34, %c0_35, %c0_36], %25 {strides = array<i32>} : memref<2x8x128xf32, #tpu.memory_space<vmem>>, vector<2x8x128xf32>,
    } else {
    }
    %c0 = arith.constant 0 : index
    %c0_1 = arith.constant 0 : index
    %c0_2 = arith.constant 0 : index
    %3 = vector.load %arg2[%c0, %c0_1, %c0_2] : memref<2x8x128xf32, #tpu.memory_space<vmem>>, vector<2x8x128xf32>
    %c0_3 = arith.constant 0 : index
    %c0_4 = arith.constant 0 : index
    %c0_5 = arith.constant 0 : index
    %4 = vector.load %arg3[%c0_3, %c0_4, %c0_5] : memref<2x8x128xf32, #tpu.memory_space<vmem>>, vector<2x8x128xf32>
    %c0_6 = arith.constant 0 : index
    %c0_7 = arith.constant 0 : index
    %c0_8 = arith.constant 0 : index
    %5 = vector.load %arg7[%c0_6, %c0_7, %c0_8] : memref<2x8x128xf32, #tpu.memory_space<vmem>>, vector<2x8x128xf32>
    %6 = arith.mulf %3, %4 : vector<2x8x128xf32>
    %7 = arith.addf %5, %6 : vector<2x8x128xf32>
    %c0_9 = arith.constant 0 : index
    %c0_10 = arith.constant 0 : index
    %c0_11 = arith.constant 0 : index
    %8 = vector.load %arg7[%c0_9, %c0_10, %c0_11] : memref<2x8x128xf32, #tpu.memory_space<vmem>>, vector<2x8x128xf32>
    tpu.vector_store %arg7[%c0_9, %c0_10, %c0_11], %7 {strides = array<i32>} : memref<2x8x128xf32, #tpu.memory_space<vmem>>, vector<2x8x128xf32>,
    %c0_12 = arith.constant 0 : index
    %c0_13 = arith.constant 0 : index
    %c0_14 = arith.constant 0 : index
    %9 = vector.load %arg8[%c0_12, %c0_13, %c0_14] : memref<2x8x128xf32, #tpu.memory_space<vmem>>, vector<2x8x128xf32>
    %10 = arith.mulf %4, %4 : vector<2x8x128xf32>
    %11 = arith.addf %9, %10 : vector<2x8x128xf32>
    %c0_15 = arith.constant 0 : index
    %c0_16 = arith.constant 0 : index
    %c0_17 = arith.constant 0 : index
    %12 = vector.load %arg8[%c0_15, %c0_16, %c0_17] : memref<2x8x128xf32, #tpu.memory_space<vmem>>, vector<2x8x128xf32>
    tpu.vector_store %arg8[%c0_15, %c0_16, %c0_17], %11 {strides = array<i32>} : memref<2x8x128xf32, #tpu.memory_space<vmem>>, vector<2x8x128xf32>,
    %13 = arith.subf %4, %3 : vector<2x8x128xf32>
    %c0_18 = arith.constant 0 : index
    %c0_19 = arith.constant 0 : index
    %c0_20 = arith.constant 0 : index
    %14 = vector.load %arg9[%c0_18, %c0_19, %c0_20] : memref<2x8x128xf32, #tpu.memory_space<vmem>>, vector<2x8x128xf32>
    %15 = arith.mulf %13, %13 : vector<2x8x128xf32>
    %16 = arith.addf %14, %15 : vector<2x8x128xf32>
    %c0_21 = arith.constant 0 : index
    %c0_22 = arith.constant 0 : index
    %c0_23 = arith.constant 0 : index
    %17 = vector.load %arg9[%c0_21, %c0_22, %c0_23] : memref<2x8x128xf32, #tpu.memory_space<vmem>>, vector<2x8x128xf32>
    tpu.vector_store %arg9[%c0_21, %c0_22, %c0_23], %16 {strides = array<i32>} : memref<2x8x128xf32, #tpu.memory_space<vmem>>, vector<2x8x128xf32>,
    %c0_i32_24 = arith.constant 0 : i32
    %18 = arith.cmpi eq, %arg1, %c0_i32_24 : i32
    %19 = arith.extui %18 : i1 to i32
    %c0_i32_25 = arith.constant 0 : i32
    %20 = arith.cmpi ne, %19, %c0_i32_25 : i32
    scf.if %20 {
      %c0_26 = arith.constant 0 : index
      %c0_27 = arith.constant 0 : index
      %c0_28 = arith.constant 0 : index
      %21 = vector.load %arg7[%c0_26, %c0_27, %c0_28] : memref<2x8x128xf32, #tpu.memory_space<vmem>>, vector<2x8x128xf32>
      %cst = arith.constant dense<0.000000e+00> : vector<2x128xf32>
      %22 = vector.multi_reduction <add>, %21, %cst [1] : vector<2x8x128xf32> to vector<2x128xf32>
      %23 = vector.shape_cast %22 : vector<2x128xf32> to vector<1x2x128xf32>
      %c0_29 = arith.constant 0 : index
      %c0_30 = arith.constant 0 : index
      %c0_31 = arith.constant 0 : index
      %24 = vector.load %arg4[%c0_29, %c0_30, %c0_31] : memref<1x2x128xf32, #tpu.memory_space<vmem>>, vector<1x2x128xf32>
      tpu.vector_store %arg4[%c0_29, %c0_30, %c0_31], %23 {strides = array<i32>} : memref<1x2x128xf32, #tpu.memory_space<vmem>>, vector<1x2x128xf32>,
      %c0_32 = arith.constant 0 : index
      %c0_33 = arith.constant 0 : index
      %c0_34 = arith.constant 0 : index
      %25 = vector.load %arg8[%c0_32, %c0_33, %c0_34] : memref<2x8x128xf32, #tpu.memory_space<vmem>>, vector<2x8x128xf32>
      %cst_35 = arith.constant dense<0.000000e+00> : vector<2x128xf32>
      %26 = vector.multi_reduction <add>, %25, %cst_35 [1] : vector<2x8x128xf32> to vector<2x128xf32>
      %27 = vector.shape_cast %26 : vector<2x128xf32> to vector<1x2x128xf32>
      %c0_36 = arith.constant 0 : index
      %c0_37 = arith.constant 0 : index
      %c0_38 = arith.constant 0 : index
      %28 = vector.load %arg5[%c0_36, %c0_37, %c0_38] : memref<1x2x128xf32, #tpu.memory_space<vmem>>, vector<1x2x128xf32>
      tpu.vector_store %arg5[%c0_36, %c0_37, %c0_38], %27 {strides = array<i32>} : memref<1x2x128xf32, #tpu.memory_space<vmem>>, vector<1x2x128xf32>,
      %c0_39 = arith.constant 0 : index
      %c0_40 = arith.constant 0 : index
      %c0_41 = arith.constant 0 : index
      %29 = vector.load %arg9[%c0_39, %c0_40, %c0_41] : memref<2x8x128xf32, #tpu.memory_space<vmem>>, vector<2x8x128xf32>
      %cst_42 = arith.constant dense<0.000000e+00> : vector<2x128xf32>
      %30 = vector.multi_reduction <add>, %29, %cst_42 [1] : vector<2x8x128xf32> to vector<2x128xf32>
      %31 = vector.shape_cast %30 : vector<2x128xf32> to vector<1x2x128xf32>
      %c0_43 = arith.constant 0 : index
      %c0_44 = arith.constant 0 : index
      %c0_45 = arith.constant 0 : index
      %32 = vector.load %arg6[%c0_43, %c0_44, %c0_45] : memref<1x2x128xf32, #tpu.memory_space<vmem>>, vector<1x2x128xf32>
      tpu.vector_store %arg6[%c0_43, %c0_44, %c0_45], %31 {strides = array<i32>} : memref<1x2x128xf32, #tpu.memory_space<vmem>>, vector<1x2x128xf32>,
    } else {
    }
    return
  }
  func.func @transform_0(%arg0: i32, %arg1: i32) -> (i32, i32, i32) {
    %c1_i32 = arith.constant 1 : i32
    %0 = arith.muli %arg0, %c1_i32 : i32
    %1 = arith.addi %0, %arg1 : i32
    %c0_i32 = arith.constant 0 : i32
    %2 = arith.minsi %1, %c0_i32 : i32
    %c0_i32_0 = arith.constant 0 : i32
    %c0_i32_1 = arith.constant 0 : i32
    %c0_i32_2 = arith.constant 0 : i32
    return %c0_i32_0, %2, %c0_i32_1 : i32, i32, i32
  }
  func.func @transform_1(%arg0: i32, %arg1: i32) -> (i32, i32, i32) {
    %c1_i32 = arith.constant 1 : i32
    %0 = arith.muli %arg0, %c1_i32 : i32
    %1 = arith.addi %0, %arg1 : i32
    %c0_i32 = arith.constant 0 : i32
    %2 = arith.minsi %1, %c0_i32 : i32
    %c0_i32_0 = arith.constant 0 : i32
    %c0_i32_1 = arith.constant 0 : i32
    %c0_i32_2 = arith.constant 0 : i32
    return %c0_i32_0, %2, %c0_i32_1 : i32, i32, i32
  }
  func.func @transform_2(%arg0: i32, %arg1: i32) -> (i32, i32, i32) {
    %c0_i32 = arith.constant 0 : i32
    %c0_i32_0 = arith.constant 0 : i32
    %c0_i32_1 = arith.constant 0 : i32
    return %arg0, %c0_i32, %c0_i32_0 : i32, i32, i32
  }
  func.func @transform_3(%arg0: i32, %arg1: i32) -> (i32, i32, i32) {
    %c0_i32 = arith.constant 0 : i32
    %c0_i32_0 = arith.constant 0 : i32
    %c0_i32_1 = arith.constant 0 : i32
    return %arg0, %c0_i32, %c0_i32_0 : i32, i32, i32
  }
  func.func @transform_4(%arg0: i32, %arg1: i32) -> (i32, i32, i32) {
    %c0_i32 = arith.constant 0 : i32
    %c0_i32_0 = arith.constant 0 : i32
    %c0_i32_1 = arith.constant 0 : i32
    return %arg0, %c0_i32, %c0_i32_0 : i32, i32, i32
  }
}

</mosaic_0001>

<llo_original>
// kernel: sdsnr_loss.1
$region0: #{sdsnr_loss.1}
  #allocation0 [shape = 'u32[]', space=smem, size = 0x4, offset = 0x4, fixed_abs, tag = 'smem constant byte address 0x4 - core index']
  #allocation1 [shape = 'u32[144,128]{1,0:T(1,128)}', space=vmem, size = 0x12000, scoped, tag = 'internal scratch']
  #allocation2 [shape = 'f32[2,8,128]{2,1,0:T(8,128)}', space=vmem, size = 0x2000, scoped, tag = 'scratch operand']
  #allocation3 [shape = 'f32[2,8,128]{2,1,0:T(8,128)}', space=vmem, size = 0x2000, scoped, tag = 'scratch operand']
  #allocation4 [shape = 'f32[2,8,128]{2,1,0:T(8,128)}', space=vmem, size = 0x2000, scoped, tag = 'scratch operand']
  %s0 = inlined_call_operand.vmem [shape: f32[2,8,128], index: 0, kind: input, shape index: {}]
  %s1 = inlined_call_operand.vmem [shape: f32[2,8,128], index: 1, kind: input, shape index: {}]
  %s2 = inlined_call_operand.vmem [shape: f32[1,2,128], index: 2, kind: output, shape index: {0}]
  %s3 = inlined_call_operand.vmem [shape: f32[1,2,128], index: 3, kind: output, shape index: {1}]
  %s4 = inlined_call_operand.vmem [shape: f32[1,2,128], index: 4, kind: output, shape index: {2}]
  %5 = xla_tuple %s2, %s3, %s4
  %s6 = sld [smem:[#allocation0]]
  $region42: #{sdsnr_loss.1} parent=0
    _
  %s8 = ssub.s32 1, %s6
  %s9 = scalar_select 0, %s8, %s6
  // Predicated region
  $region2: #{sdsnr_loss.1} parent=0 // pred_check
    _
  $region3: #{sdsnr_loss.1} parent=0 // pred_check_branch
    %11 = sbr.rel (0) target = $region5
  $region4: #{sdsnr_loss.1} parent=0 // pred_region
    %s12 = sadd.s32 0, 0
    %p13 = scmp.lt.s32.totalorder %s12, 0
    %s14 = scalar_select %p13, %s12, 0
    %p15 = scmp.lt.s32.totalorder %s14, 0
    %s16 = scalar_select %p15, %s14, 0
    %s17 = smul.addr %s16, 8
    %s18 = scalar_lea.vmem %s0, %s17
    %s19 = sadd.s32 0, 0
    %p20 = scmp.lt.s32.totalorder %s19, 0
    %s21 = scalar_select %p20, %s19, 0
  $region5: #{sdsnr_loss.1} parent=0 // pred_fallthru
    _
  // Predicated region
  $region6: #{sdsnr_loss.1} parent=0 // pred_check
    _
  $region7: #{sdsnr_loss.1} parent=0 // pred_check_branch
    %23 = sbr.rel (0) target = $region9
  $region8: #{sdsnr_loss.1} parent=0 // pred_region
    %s24 = sadd.s32 0, 0
    %p25 = scmp.lt.s32.totalorder %s24, 0
    %s26 = scalar_select %p25, %s24, 0
    %p27 = scmp.lt.s32.totalorder %s26, 0
    %s28 = scalar_select %p27, %s26, 0
    %s29 = smul.addr %s28, 8
    %s30 = scalar_lea.vmem %s1, %s29
    %s31 = sadd.s32 0, 0
    %p32 = scmp.lt.s32.totalorder %s31, 0
    %s33 = scalar_select %p32, %s31, 0
  $region9: #{sdsnr_loss.1} parent=0 // pred_fallthru
    _
  %s34 = sadd.s32 0, 0
  %p35 = scmp.lt.s32.totalorder %s34, 0
  %s36 = scalar_select %p35, %s34, 0
  %p37 = scmp.lt.s32.totalorder %s36, 0
  %s38 = scalar_select %p37, %s36, 0
  %s39 = smul.addr %s38, 8
  %s40 = scalar_lea.vmem %s0, %s39
  %s41 = sadd.s32 0, 0
  %p42 = scmp.lt.s32.totalorder %s41, 0
  %s43 = scalar_select %p42, %s41, 0
  %p44 = scmp.lt.s32.totalorder %s43, 0
  %s45 = scalar_select %p44, %s43, 0
  %s46 = smul.addr %s45, 8
  %s47 = scalar_lea.vmem %s1, %s46
  %s48 = sadd.s32 0, 0
  %p49 = scmp.lt.s32.totalorder %s48, 0
  %s50 = scalar_select %p49, %s48, 0
  %p51 = scmp.lt.s32.totalorder %s50, 0
  %s52 = scalar_select %p51, %s50, 0
  %s53 = smul.addr %s52, 8
  %s54 = scalar_lea.vmem %s0, %s53
  %s55 = sadd.s32 0, 0
  %p56 = scmp.lt.s32.totalorder %s55, 0
  %s57 = scalar_select %p56, %s55, 0
  %s58 = sadd.s32 0, 0
  %p59 = scmp.lt.s32.totalorder %s58, 0
  %s60 = scalar_select %p59, %s58, 0
  %p61 = scmp.lt.s32.totalorder %s60, 0
  %s62 = scalar_select %p61, %s60, 0
  %s63 = smul.addr %s62, 8
  %s64 = scalar_lea.vmem %s1, %s63
  %s65 = sadd.s32 0, 0
  %p66 = scmp.lt.s32.totalorder %s65, 0
  %s67 = scalar_select %p66, %s65, 0
  %p68 = scmp.eq.s32.totalorder 0, 0
  // Predicated region
  $region10: #{sdsnr_loss.1} parent=0 // pred_check
    %p69 = pneg %p68
  $region11: #{sdsnr_loss.1} parent=0 // pred_check_branch
    %71 = sbr.rel (%p69) target = $region13
  $region12: #{sdsnr_loss.1} parent=0 // pred_region
    %72 = vst [vmem:[#allocation2] sm:$0xff] 0.0
    %73 = vst [vmem:[#allocation2 + $0x8] sm:$0xff] 0.0
    %74 = vst [vmem:[#allocation3] sm:$0xff] 0.0
    %75 = vst [vmem:[#allocation3 + $0x8] sm:$0xff] 0.0
    %76 = vst [vmem:[#allocation4] sm:$0xff] 0.0
    %77 = vst [vmem:[#allocation4 + $0x8] sm:$0xff] 0.0
  $region13: #{sdsnr_loss.1} parent=0 // pred_fallthru
    _
  %v78 = vld [vmem:[%s54] sm:$0xff]
  %v79 = vld [vmem:[%s54 + $0x8] sm:$0xff]
  %v80 = vld [vmem:[%s64] sm:$0xff]
  %v81 = vld [vmem:[%s64 + $0x8] sm:$0xff]
  %v82 = vld [vmem:[#allocation2] sm:$0xff]
  %v83 = vld [vmem:[#allocation2 + $0x8] sm:$0xff]
  %v84 = vmul.f32 %v78, %v80
  %v85 = vmul.f32 %v79, %v81
  %v86 = vadd.f32 %v82, %v84
  %v87 = vadd.f32 %v83, %v85
  %88 = vst [vmem:[#allocation2] sm:$0xff] %v86
  %89 = vst [vmem:[#allocation2 + $0x8] sm:$0xff] %v87
  %v90 = vld [vmem:[#allocation3] sm:$0xff]
  %v91 = vld [vmem:[#allocation3 + $0x8] sm:$0xff]
  %v92 = vmul.f32 %v80, %v80
  %v93 = vmul.f32 %v81, %v81
  %v94 = vadd.f32 %v90, %v92
  %v95 = vadd.f32 %v91, %v93
  %96 = vst [vmem:[#allocation3] sm:$0xff] %v94
  %97 = vst [vmem:[#allocation3 + $0x8] sm:$0xff] %v95
  %v98 = vsub.f32 %v80, %v78
  %v99 = vsub.f32 %v81, %v79
  %v100 = vld [vmem:[#allocation4] sm:$0xff]
  %v101 = vld [vmem:[#allocation4 + $0x8] sm:$0xff]
  %v102 = vmul.f32 %v98, %v98
  %v103 = vmul.f32 %v99, %v99
  %v104 = vadd.f32 %v100, %v102
  %v105 = vadd.f32 %v101, %v103
  %106 = vst [vmem:[#allocation4] sm:$0xff] %v104
  %107 = vst [vmem:[#allocation4 + $0x8] sm:$0xff] %v105
  // Predicated region
  $region14: #{sdsnr_loss.1} parent=0 // pred_check
    %p108 = pneg %p68
  $region15: #{sdsnr_loss.1} parent=0 // pred_check_branch
    %110 = sbr.rel (%p108) target = $region17
  $region16: #{sdsnr_loss.1} parent=0 // pred_region
    %v111 = vld [vmem:[#allocation2] sm:$0xff]
    %v112 = vld [vmem:[#allocation2 + $0x8] sm:$0xff]
    %v113 = vrot.slane %v111, 4
    %v114 = vadd.f32 %v111, %v113
    %v115 = vrot.slane %v114, 2
    %v116 = vadd.f32 %v114, %v115
    %v117 = vrot.slane %v116, 1
    %v118 = vadd.f32 %v116, %v117
    %v119 = vrot.slane %v112, 4
    %v120 = vadd.f32 %v112, %v119
    %v121 = vrot.slane %v120, 2
    %v122 = vadd.f32 %v120, %v121
    %v123 = vrot.slane %v122, 1
    %v124 = vadd.f32 %v122, %v123
    %vm127 = vcmask 1041409
    %v128 = vsel %vm127, %v124, %v118
    %130 = vst [vmem:[%s2] sm:$0x3] %v128
    %v131 = vld [vmem:[#allocation3] sm:$0xff]
    %v132 = vld [vmem:[#allocation3 + $0x8] sm:$0xff]
    %v133 = vrot.slane %v131, 4
    %v134 = vadd.f32 %v131, %v133
    %v135 = vrot.slane %v134, 2
    %v136 = vadd.f32 %v134, %v135
    %v137 = vrot.slane %v136, 1
    %v138 = vadd.f32 %v136, %v137
    %v139 = vrot.slane %v132, 4
    %v140 = vadd.f32 %v132, %v139
    %v141 = vrot.slane %v140, 2
    %v142 = vadd.f32 %v140, %v141
    %v143 = vrot.slane %v142, 1
    %v144 = vadd.f32 %v142, %v143
    %v147 = vsel %vm127, %v144, %v138
    %149 = vst [vmem:[%s3] sm:$0x3] %v147
    %v150 = vld [vmem:[#allocation4] sm:$0xff]
    %v151 = vld [vmem:[#allocation4 + $0x8] sm:$0xff]
    %v152 = vrot.slane %v150, 4
    %v153 = vadd.f32 %v150, %v152
    %v154 = vrot.slane %v153, 2
    %v155 = vadd.f32 %v153, %v154
    %v156 = vrot.slane %v155, 1
    %v157 = vadd.f32 %v155, %v156
    %v158 = vrot.slane %v151, 4
    %v159 = vadd.f32 %v151, %v158
    %v160 = vrot.slane %v159, 2
    %v161 = vadd.f32 %v159, %v160
    %v162 = vrot.slane %v161, 1
    %v163 = vadd.f32 %v161, %v162
    %v166 = vsel %vm127, %v163, %v157
    %168 = vst [vmem:[%s4] sm:$0x3] %v166
  $region17: #{sdsnr_loss.1} parent=0 // pred_fallthru
    _
  // Predicated region
  $region18: #{sdsnr_loss.1} parent=0 // pred_check
    _
  $region19: #{sdsnr_loss.1} parent=0 // pred_check_branch
    %170 = sbr.rel (0) target = $region21
  $region20: #{sdsnr_loss.1} parent=0 // pred_region
    _
  $region21: #{sdsnr_loss.1} parent=0 // pred_fallthru
    _
  // Predicated region
  $region22: #{sdsnr_loss.1} parent=0 // pred_check
    _
  $region23: #{sdsnr_loss.1} parent=0 // pred_check_branch
    %172 = sbr.rel (0) target = $region25
  $region24: #{sdsnr_loss.1} parent=0 // pred_region
    _
  $region25: #{sdsnr_loss.1} parent=0 // pred_fallthru
    _
  // Predicated region
  $region26: #{sdsnr_loss.1} parent=0 // pred_check
    _
  $region27: #{sdsnr_loss.1} parent=0 // pred_check_branch
    %174 = sbr.rel (0) target = $region29
  $region28: #{sdsnr_loss.1} parent=0 // pred_region
    _
  $region29: #{sdsnr_loss.1} parent=0 // pred_fallthru
    _
  // Predicated region
  $region30: #{sdsnr_loss.1} parent=0 // pred_check
    _
  $region31: #{sdsnr_loss.1} parent=0 // pred_check_branch
    %176 = sbr.rel (0) target = $region33
  $region32: #{sdsnr_loss.1} parent=0 // pred_region
    _
  $region33: #{sdsnr_loss.1} parent=0 // pred_fallthru
    _
  // Predicated region
  $region34: #{sdsnr_loss.1} parent=0 // pred_check
    _
  $region35: #{sdsnr_loss.1} parent=0 // pred_check_branch
    %178 = sbr.rel (0) target = $region37
  $region36: #{sdsnr_loss.1} parent=0 // pred_region
    _
  $region37: #{sdsnr_loss.1} parent=0 // pred_fallthru
    _
  // Predicated region
  $region38: #{sdsnr_loss.1} parent=0 // pred_check
    _
  $region39: #{sdsnr_loss.1} parent=0 // pred_check_branch
    %180 = sbr.rel (0) target = $region41
  $region40: #{sdsnr_loss.1} parent=0 // pred_region
    _
  $region41: #{sdsnr_loss.1} parent=0 // pred_fallthru
    _

</llo_original>
